<compile_context>
chip_gen: v7x
topology: tpu7x:2x2x1
jax: 0.10.0
libtpu: 0.0.40
codegen_flags: <defaults>
</compile_context>

<pallas_src>
import jax
import jax.numpy as jnp
from jax.experimental import pallas as pl
from jax.experimental.pallas import tpu as pltpu


def _round_up(v, m):
    return ((v + m - 1) // m) * m


def _linear_kernel(x_ref, w_ref, b_ref, o_ref):
    # x_ref: (TM, K)   w_ref: (K, N)   b_ref: (1, N)   o_ref: (TM, N)
    acc = jnp.dot(x_ref[...], w_ref[...], preferred_element_type=jnp.float32)
    o_ref[...] = (acc + b_ref[...]).astype(o_ref.dtype)


def ie_block_prepare(weight, bias, ie_input_len):
    """One-time parameter setup (hoisted out of the per-call path).

    Args:
      weight: (out_num, input_num) float32   (PyTorch nn.Linear layout)
      bias:   (out_num,) float32
      ie_input_len: n, number of pieces.
    Returns:
      w_bd: (n*input_num, n*out_num) block-diagonal weight
      b_bd: (1, n*out_num) tiled bias
    """
    n = ie_input_len
    w_bd = jnp.kron(jnp.eye(n, dtype=weight.dtype), weight.T)   # (K, N)
    b_bd = jnp.tile(bias, n).reshape(1, n * bias.shape[0])      # (1, N)
    return w_bd, b_bd


def ie_block_forward(x, w_bd, b_bd, ie_input_len):
    """Pallas implementation of IE_block.forward.

    Args:
      x:    (B, C, L) float32 with L % ie_input_len == 0
      w_bd: (n*data_len, n*out_num) prepared block-diagonal weight
      b_bd: (1, n*out_num) prepared tiled bias
      ie_input_len: n, number of pieces.
    Returns:
      (B, C, n, out_num) float32
    """
    B, C, L = x.shape
    n = ie_input_len
    assert L % n == 0, "L must be divisible by IE_Input_len"
    data_len = L // n                       # == input_num
    K, N = w_bd.shape
    assert K == n * data_len, "prepared weight does not match x / n"
    out_num = N // n

    M = B * C
    x2d = x.reshape(M, K)                   # pure reshape, no data movement

    # ---- M tiling ---------------------------------------------------------
    # TM multiple of 8, capped at 4096 rows (double-buffered x+out tiles
    # ~12 MiB with lanes padded to 128), and capped so the grid has >=4
    # steps when M is large enough (>=2 steps per TC on v7x megacore).
    TM_CAP = 4096
    MIN_STEPS = 4
    tm_target = _round_up(pl.cdiv(M, MIN_STEPS), 8)
    TM = max(8, min(TM_CAP, tm_target))
    grid = (pl.cdiv(M, TM),)                # ragged last block handled by Pallas

    # VMEM budget with the real lane-padded footprint:
    #   x tile: TM x 128 lanes (K=64 pads to 128), out tile: TM x N, both f32,
    #   double-buffered; weights/bias are small and VMEM-resident.
    K_lanes = _round_up(K, 128)
    vmem_needed = 2 * (TM * K_lanes * 4 + TM * N * 4) + 2 * (K * N * 4 + 8 * N * 4)
    vmem_limit = min(max(2 * vmem_needed, 16 * 1024 * 1024), 48 * 1024 * 1024)

    # Useful FLOPs only (block-diagonal zeros excluded); real HBM bytes.
    cost = pl.CostEstimate(
        flops=2 * M * n * data_len * out_num,
        transcendentals=0,
        bytes_accessed=4 * (M * K + K * N + N + M * N),
    )

    out2d = pl.pallas_call(
        _linear_kernel,
        out_shape=jax.ShapeDtypeStruct((M, N), jnp.float32),
        grid=grid,
        in_specs=[
            pl.BlockSpec((TM, K), lambda i: (i, 0)),   # streamed over M
            pl.BlockSpec((K, N), lambda i: (0, 0)),    # weight: VMEM-resident
            pl.BlockSpec((1, N), lambda i: (0, 0)),    # bias:   VMEM-resident
        ],
        out_specs=pl.BlockSpec((TM, N), lambda i: (i, 0)),
        compiler_params=pltpu.CompilerParams(
            dimension_semantics=("parallel",),          # megacore-sharded on v7x
            vmem_limit_bytes=vmem_limit,
        ),
        cost_estimate=cost,
    )(x2d, w_bd, b_bd)

    return out2d.reshape(B, C, n, out_num)


def ie_block_reference(x, weight, bias, ie_input_len):
    """Pure-JAX reference matching the PyTorch module exactly."""
    B, C, L = x.shape
    n = ie_input_len
    data_len = L // n
    xr = x.reshape(B, C, L, 1)
    pieces = [xr[:, :, data_len * i:data_len * (i + 1), :] for i in range(n)]
    res = jnp.concatenate(pieces, axis=3)          # (B, C, data_len, n)
    res = jnp.swapaxes(res, 2, 3)                  # (B, C, n, data_len)
    return res @ weight.T + bias                   # (B, C, n, out_num)


if __name__ == "__main__":
    # Small shapes consistent with the module:
    #   B=2, C=4, L=64, IE_Input_len=8  =>  input_num = 64 // 8 = 8
    #   out_num = 32
    B, C, L = 2, 4, 64
    IE_Input_len = 8
    input_num = L // IE_Input_len      # 8
    out_num = 32

    key = jax.random.PRNGKey(0)
    kx, kw, kb = jax.random.split(key, 3)
    x = jax.random.normal(kx, (B, C, L), dtype=jnp.float32)
    # Deterministic nn.Linear-style init (uniform in +-1/sqrt(input_num))
    bound = 1.0 / (input_num ** 0.5)
    weight = jax.random.uniform(kw, (out_num, input_num), jnp.float32,
                                -bound, bound)
    bias = jax.random.uniform(kb, (out_num,), jnp.float32, -bound, bound)

    # Parameter prep is done once (not per forward call).
    w_bd, b_bd = ie_block_prepare(weight, bias, IE_Input_len)
    w_bd = jax.block_until_ready(w_bd)
    b_bd = jax.block_until_ready(b_bd)

    out = ie_block_forward(x, w_bd, b_bd, IE_Input_len)
    out = jax.block_until_ready(out)

    ref = ie_block_reference(x, weight, bias, IE_Input_len)
    assert out.shape == (B, C, IE_Input_len, out_num), out.shape
    assert jnp.allclose(out, ref, atol=1e-5, rtol=1e-5), "mismatch vs reference"

    print("KERNEL_OK")
</pallas_src>

<mosaic_0001>
module attributes {stable_mosaic.version = 11 : i64} {
  func.func @_linear_kernel(%arg0: i32, %arg1: memref<8x64xf32, #tpu.memory_space<vmem>>, %arg2: memref<64x256xf32, #tpu.memory_space<vmem>>, %arg3: memref<1x256xf32, #tpu.memory_space<vmem>>, %arg4: memref<8x256xf32, #tpu.memory_space<vmem>>) attributes {dimension_semantics = [#tpu.dimension_semantics<parallel>], iteration_bounds = array<i64: 1>, scalar_prefetch = 0 : i64, scratch_operands = 0 : i64, tpu.core_type = #tpu.core_type<tc>, window_params = [{transform_indices = @transform_0, window_bounds = array<i64: 8, 64>}, {pipeline_mode = #tpu.pipeline_mode<synchronous>, transform_indices = @transform_1, window_bounds = array<i64: 64, 256>}, {pipeline_mode = #tpu.pipeline_mode<synchronous>, transform_indices = @transform_2, window_bounds = array<i64: 1, 256>}, {transform_indices = @transform_3, window_bounds = array<i64: 8, 256>}]} {
    %c0 = arith.constant 0 : index
    %c0_0 = arith.constant 0 : index
    %0 = vector.load %arg1[%c0, %c0_0] : memref<8x64xf32, #tpu.memory_space<vmem>>, vector<8x64xf32>
    %c0_1 = arith.constant 0 : index
    %c0_2 = arith.constant 0 : index
    %1 = vector.load %arg2[%c0_1, %c0_2] : memref<64x256xf32, #tpu.memory_space<vmem>>, vector<64x256xf32>
    %cst = arith.constant dense<0.000000e+00> : vector<8x256xf32>
    %2 = tpu.matmul %0, %1, %cst {dimension_numbers = #tpu.dot_dimension_numbers<[1], [0], [0], [1], [0, 0, 1, 1], [], []>} : vector<8x64xf32>, vector<64x256xf32>, vector<8x256xf32> -> vector<8x256xf32>
    %c0_3 = arith.constant 0 : index
    %c0_4 = arith.constant 0 : index
    %3 = vector.load %arg3[%c0_3, %c0_4] : memref<1x256xf32, #tpu.memory_space<vmem>>, vector<1x256xf32>
    %4 = vector.broadcast %3 : vector<1x256xf32> to vector<8x256xf32>
    %5 = arith.addf %2, %4 : vector<8x256xf32>
    %c0_5 = arith.constant 0 : index
    %c0_6 = arith.constant 0 : index
    %6 = vector.load %arg4[%c0_5, %c0_6] : memref<8x256xf32, #tpu.memory_space<vmem>>, vector<8x256xf32>
    tpu.vector_store %arg4[%c0_5, %c0_6], %5 {strides = array<i32>} : memref<8x256xf32, #tpu.memory_space<vmem>>, vector<8x256xf32>,
    return
  }
  func.func @transform_0(%arg0: i32) -> (i32, i32) {
    %c0_i32 = arith.constant 0 : i32
    %c0_i32_0 = arith.constant 0 : i32
    return %arg0, %c0_i32 : i32, i32
  }
  func.func @transform_1(%arg0: i32) -> (i32, i32) {
    %c0_i32 = arith.constant 0 : i32
    %c0_i32_0 = arith.constant 0 : i32
    %c0_i32_1 = arith.constant 0 : i32
    return %c0_i32, %c0_i32_0 : i32, i32
  }
  func.func @transform_2(%arg0: i32) -> (i32, i32) {
    %c0_i32 = arith.constant 0 : i32
    %c0_i32_0 = arith.constant 0 : i32
    %c0_i32_1 = arith.constant 0 : i32
    return %c0_i32, %c0_i32_0 : i32, i32
  }
  func.func @transform_3(%arg0: i32) -> (i32, i32) {
    %c0_i32 = arith.constant 0 : i32
    %c0_i32_0 = arith.constant 0 : i32
    return %arg0, %c0_i32 : i32, i32
  }
}

</mosaic_0001>

<llo_original>
// kernel: tpu_custom_call.1
$region0: #{tpu_custom_call.1}
  #allocation0 [shape = 'u32[]', space=smem, size = 0x4, offset = 0x4, fixed_abs, tag = 'smem constant byte address 0x4 - core index']
  #allocation1 [shape = 'u32[144,128]{1,0:T(1,128)}', space=vmem, size = 0x12000, scoped, tag = 'internal scratch']
  %s0 = inlined_call_operand.hbm [shape: f32[8,64], index: 0, kind: input, shape index: {}]
  %s1 = inlined_call_operand.hbm [shape: f32[64,256], index: 1, kind: input, shape index: {}]
  %s2 = inlined_call_operand.vmem [shape: f32[1,256], index: 2, kind: input, shape index: {}]
  %s3 = inlined_call_operand.hbm [shape: f32[8,256], index: 3, kind: output, shape index: {}]
  %s4 = sld [smem:[#allocation0]]
  $region30: #{tpu_custom_call.1} parent=0
    _
  %s6 = ssub.s32 1, %s4
  %s7 = scalar_select 0, %s6, %s4
  $region1: #{tpu_custom_call.1} parent=0
    #allocation2 [shape = 'u8[4096]{0}', space=vmem, size = 0x1000, scoped, tag = 'input window, operand 0, single buffered']
    #allocation3 [shape = 's32[1]{0}', space=sflag, size = 0x4, scoped, tag = 'scoped memory for tpu_custom_call.1']
    #allocation4 [shape = 's32[1]{0}', space=sflag, size = 0x4, scoped, tag = 'scoped memory for tpu_custom_call.1']
    #allocation5 [shape = 'u8[65536]{0}', space=vmem, size = 0x10000, scoped, tag = 'input window, operand 1, single buffered']
    #allocation6 [shape = 's32[1]{0}', space=sflag, size = 0x4, scoped, tag = 'scoped memory for tpu_custom_call.1']
    #allocation7 [shape = 'u8[8192]{0}', space=vmem, size = 0x2000, scoped, tag = 'output window, operand 0, single buffered']
    %8 = vsyncpa [#allocation3], 0
    %9 = vsyncpa [#allocation6], 0
    %10 = vsyncpa [#allocation4], 0
    // Predicated region
    $region2: #{tpu_custom_call.1} parent=1 // pred_check
      _
    $region3: #{tpu_custom_call.1} parent=1 // pred_check_branch
      %12 = sbr.rel (0) target = $region5
    $region4: #{tpu_custom_call.1} parent=1 // pred_region
      %s14 = ssub.s32 128, 128
      %15 = vsyncadd [#allocation3], %s14
      %s17 = sshll.u32 [#allocation2], 4
      %s18 = int_to_ptr.vmem [resolvable:$true] %s17
      %20 = dma.hbm_to_vmem [thread:$0]  %s0, 128, %s18, [#allocation3]
    $region5: #{tpu_custom_call.1} parent=1 // pred_fallthru
      _
    // Predicated region
    $region6: #{tpu_custom_call.1} parent=1 // pred_check
      _
    $region7: #{tpu_custom_call.1} parent=1 // pred_check_branch
      %22 = sbr.rel (0) target = $region9
    $region8: #{tpu_custom_call.1} parent=1 // pred_region
      %s24 = ssub.s32 2048, 2048
      %25 = vsyncadd [#allocation6], %s24
      %s26 = sshll.u32 [#allocation5], 4
      %s27 = int_to_ptr.vmem [resolvable:$true] %s26
      %32 = dma.hbm_to_vmem [thread:$0]  %s1, 2048, %s27, [#allocation6], 256, 256, 16
    $region9: #{tpu_custom_call.1} parent=1 // pred_fallthru
      _
    // Predicated region
    $region10: #{tpu_custom_call.1} parent=1 // pred_check
      _
    $region11: #{tpu_custom_call.1} parent=1 // pred_check_branch
      %34 = sbr.rel (0) target = $region13
    $region12: #{tpu_custom_call.1} parent=1 // pred_region
      _
    $region13: #{tpu_custom_call.1} parent=1 // pred_fallthru
      _
    // Predicated region
    $region14: #{tpu_custom_call.1} parent=1 // pred_check
      _
    $region15: #{tpu_custom_call.1} parent=1 // pred_check_branch
      %36 = sbr.rel (0) target = $region17
    $region16: #{tpu_custom_call.1} parent=1 // pred_region
      %37 = dma.done [#allocation3], 128
    $region17: #{tpu_custom_call.1} parent=1 // pred_fallthru
      _
    // Predicated region
    $region18: #{tpu_custom_call.1} parent=1 // pred_check
      _
    $region19: #{tpu_custom_call.1} parent=1 // pred_check_branch
      %39 = sbr.rel (0) target = $region21
    $region20: #{tpu_custom_call.1} parent=1 // pred_region
      %40 = dma.done [#allocation6], 2048
    $region21: #{tpu_custom_call.1} parent=1 // pred_fallthru
      _
    %v41 = vld [vmem:[#allocation2] sm:$0xff]
    %v42 = vld [vmem:[#allocation5] sm:$0xff]
    %v43 = vld [vmem:[#allocation5 + $0x8] sm:$0xff]
    %v44 = vld [vmem:[#allocation5 + $0x10] sm:$0xff]
    %v45 = vld [vmem:[#allocation5 + $0x18] sm:$0xff]
    %v46 = vld [vmem:[#allocation5 + $0x20] sm:$0xff]
    %v47 = vld [vmem:[#allocation5 + $0x28] sm:$0xff]
    %v48 = vld [vmem:[#allocation5 + $0x30] sm:$0xff]
    %v49 = vld [vmem:[#allocation5 + $0x38] sm:$0xff]
    %v50 = vld [vmem:[#allocation5 + $0x40] sm:$0xff]
    %v51 = vld [vmem:[#allocation5 + $0x48] sm:$0xff]
    %v52 = vld [vmem:[#allocation5 + $0x50] sm:$0xff]
    %v53 = vld [vmem:[#allocation5 + $0x58] sm:$0xff]
    %v54 = vld [vmem:[#allocation5 + $0x60] sm:$0xff]
    %v55 = vld [vmem:[#allocation5 + $0x68] sm:$0xff]
    %v56 = vld [vmem:[#allocation5 + $0x70] sm:$0xff]
    %v57 = vld [vmem:[#allocation5 + $0x78] sm:$0xff]
    %v58 = vld [vmem:[%s2] sm:$0x3]
    %v60 = vlaneseq
    %v61 = vshrl.u32 %v60, 7
    %v62 = vsub.s32 0, %v61
    %v63 = vrot.slane %v58, %v62
    %v64 = vlaneseq
    %v65 = vshrl.u32 %v64, 7
    %v66 = vsub.s32 1, %v65
    %v67 = vrot.slane %v58, %v66
    %vm70 = vcmask 523264
    %v72 = vsel %vm70, %v41, 0
    %74 = vmatprep.subr.mxu0 %v43
    %75 = vmatpush1.msra.mxu0 %v42
    %76 = vmatprep.subr.mxu0 %v45
    %77 = vmatpush1.msra.mxu0 %v44
    %78 = vmatprep.subr.mxu0 %v47
    %79 = vmatpush1.msra.mxu0 %v46
    %80 = vmatprep.subr.mxu0 %v49
    %81 = vmatpush1.msra.mxu0 %v48
    %82 = vmatprep.subr.mxu0 %v51
    %83 = vmatpush1.msra.mxu0 %v50
    %84 = vmatprep.subr.mxu0 %v53
    %85 = vmatpush1.msra.mxu0 %v52
    %86 = vmatprep.subr.mxu0 %v55
    %87 = vmatpush1.msra.mxu0 %v54
    %88 = vmatprep.subr.mxu0 %v57
    %89 = vmatpush1.msra.mxu0 %v56
    %90 = vmatprep.subr.mxu0 0.0
    %91 = vmatpush1.msra.mxu0 0.0
    %92 = vmatprep.subr.mxu0 0.0
    %93 = vmatpush1.msra.mxu0 0.0
    %94 = vmatprep.subr.mxu0 0.0
    %95 = vmatpush1.msra.mxu0 0.0
    %96 = vmatprep.subr.mxu0 0.0
    %97 = vmatpush1.msra.mxu0 0.0
    %98 = vmatprep.subr.mxu0 0.0
    %99 = vmatpush1.msra.mxu0 0.0
    %100 = vmatprep.subr.mxu0 0.0
    %101 = vmatpush1.msra.mxu0 0.0
    %102 = vmatprep.subr.mxu0 0.0
    %103 = vmatpush1.msra.mxu0 0.0
    %104 = vmatprep.subr.mxu0 0.0
    %105 = vmatpush1.msra.mxu0 0.0
    %106 = vmatprep.subr.mxu0 0.0
    %107 = vmatpush1.msra.mxu0 0.0
    %108 = vmatprep.subr.mxu0 0.0
    %109 = vmatpush1.msra.mxu0 0.0
    %110 = vmatprep.subr.mxu0 0.0
    %111 = vmatpush1.msra.mxu0 0.0
    %112 = vmatprep.subr.mxu0 0.0
    %113 = vmatpush1.msra.mxu0 0.0
    %114 = vmatprep.subr.mxu0 0.0
    %115 = vmatpush1.msra.mxu0 0.0
    %116 = vmatprep.subr.mxu0 0.0
    %117 = vmatpush1.msra.mxu0 0.0
    %118 = vmatprep.subr.mxu0 0.0
    %119 = vmatpush1.msra.mxu0 0.0
    %120 = vmatprep.subr.mxu0 0.0
    %121 = vmatpush1.msra.mxu0 0.0
    %122 = vmatprep.subr.mxu0 0.0
    %123 = vmatpush1.msra.mxu0 0.0
    %124 = vmatprep.subr.mxu0 0.0
    %125 = vmatpush1.msra.mxu0 0.0
    %126 = vmatprep.subr.mxu0 0.0
    %127 = vmatpush1.msra.mxu0 0.0
    %128 = vmatprep.subr.mxu0 0.0
    %129 = vmatpush1.msra.mxu0 0.0
    %130 = vmatprep.subr.mxu0 0.0
    %131 = vmatpush1.msra.mxu0 0.0
    %132 = vmatprep.subr.mxu0 0.0
    %133 = vmatpush1.msra.mxu0 0.0
    %134 = vmatprep.subr.mxu0 0.0
    %135 = vmatpush1.msra.mxu0 0.0
    %136 = vmatprep.subr.mxu0 0.0
    %137 = vmatpush1.msra.mxu0 0.0
    %138 = vmatprep.mubr.f32.mxu0 0.0
    %139 = vmatmul.mubr.f32.gmra.mrb[0].mxu0 %v72
    %v140 = vpop.f32.mrb[0].mxu0
    %v141 = vadd.f32 %v63, %v140
    %v142 = vpop.f32.mrb[0].mxu0
    %v143 = vadd.f32 %v67, %v142
    %144 = vdwg.mxu0
    %145 = vst [vmem:[#allocation7] sm:$0xff] %v141
    %146 = vst [vmem:[#allocation7 + $0x8] sm:$0xff] %v143
    // Predicated region
    $region22: #{tpu_custom_call.1} parent=1 // pred_check
      _
    $region23: #{tpu_custom_call.1} parent=1 // pred_check_branch
      %148 = sbr.rel (0) target = $region25
    $region24: #{tpu_custom_call.1} parent=1 // pred_region
      %s150 = ssub.s32 256, 256
      %151 = vsyncadd [#allocation4], %s150
      %s153 = sshll.u32 [#allocation7], 4
      %s154 = int_to_ptr.vmem [resolvable:$true] %s153
      %156 = dma.vmem_to_hbm [thread:$0]  %s154, 256, %s3, [#allocation4]
    $region25: #{tpu_custom_call.1} parent=1 // pred_fallthru
      _
    // Predicated region
    $region26: #{tpu_custom_call.1} parent=1 // pred_check
      _
    $region27: #{tpu_custom_call.1} parent=1 // pred_check_branch
      %158 = sbr.rel (0) target = $region29
    $region28: #{tpu_custom_call.1} parent=1 // pred_region
      %159 = dma.done [#allocation4], 256
    $region29: #{tpu_custom_call.1} parent=1 // pred_fallthru
      _
    %160 = vsyncpa [#allocation3], 1
    %161 = vsyncpa [#allocation6], 1
    %162 = vsyncpa [#allocation4], 1

</llo_original>
